<compile_context>
chip_gen: v5e
topology: v5e:2x2
jax: 0.10.0
libtpu: 0.0.40
codegen_flags: <defaults>
</compile_context>

<pallas_src>
import jax
import jax.numpy as jnp
from jax.experimental import pallas as pl
from jax.experimental.pallas import tpu as pltpu


_LANE_CHOICES = (1024, 512, 256, 128)  # lane-dense slab widths (multiples of 128)
_MIN_ROW_TILE = 8                      # sublane granularity
_PALLAS_MIN_ELEMS = 1 << 18            # ~256K elems; below this, fused XLA wins


def _ceil_div(a, b):
    return -(-a // b)


def _round_up(a, b):
    return _ceil_div(a, b) * b


def _chip_config():
    """Returns (max_block_bytes, vmem_limit_bytes, multi_core) for this TPU."""
    vmem = None
    try:
        vmem = int(getattr(pltpu.get_tpu_info(), "vmem_capacity_bytes", 0)) or None
    except Exception:
        vmem = None
    if vmem is None:
        # Unknown chip: conservative block size that fits every generation's
        # default scoped budget; keep the multi-core step heuristic (only
        # costs a couple of 0.35us steps on single-TC chips).
        return 2 * 1024 * 1024, 32 * 1024 * 1024, True
    if vmem <= 64 * 1024 * 1024:
        # v7x-class: 64 MiB VMEM per TensorCore, 2 TensorCores per chip.
        # 2 MiB blocks -> 8 MiB in flight double-buffered (in+out), ~85% of
        # HBM roofline, lots of headroom inside the 32 MiB scoped budget.
        return 2 * 1024 * 1024, 32 * 1024 * 1024, True
    # v5e / v6e: 128 MiB physical VMEM, single TensorCore.  Bigger blocks
    # amortize the ~0.35 us per-grid-step overhead.
    return 4 * 1024 * 1024, 64 * 1024 * 1024, False


def _asym_quant_kernel(params_ref, x_ref, o_ref):
    # params_ref (SMEM): [scale, zero_point_neg, quant_max_val]
    scale = params_ref[0]
    zp = params_ref[1]
    qmax = params_ref[2]

    # Compute in f32 (the PyTorch buffers are f32); true division keeps exact
    # parity with the reference `x / scale` (a reciprocal-multiply can flip
    # round() at exact halfway points for non-power-of-two scales).
    x = x_ref[...].astype(jnp.float32)
    q = jnp.round(x / scale - zp)          # round-half-to-even == torch.round
    q = jnp.clip(q, 0.0, qmax)
    o_ref[...] = ((q + zp) * scale).astype(o_ref.dtype)


def asymmetric_quantize_ref(x, scale, zero_point_neg, quant_max_val):
    """Pure-JAX reference mirroring the PyTorch eval forward (f32 math)."""
    x32 = jnp.asarray(x).astype(jnp.float32)
    scale = jnp.asarray(scale, jnp.float32)
    zp = jnp.asarray(zero_point_neg, jnp.float32)
    qmax = jnp.asarray(quant_max_val, jnp.float32)
    q = jnp.round(x32 / scale - zp)
    out = (jnp.clip(q, 0.0, qmax) + zp) * scale
    return out.astype(jnp.asarray(x).dtype)


def asymmetric_quantize(x, scale, zero_point_neg, quant_max_val, *, force_pallas=False):
    """Fake-quantize `x` (any shape, f32/bf16/...).  Output: same shape & dtype."""
    x = jnp.asarray(x)
    total = x.size
    if total == 0:
        return x

    # Accept 0-d scalars or PyTorch-style (1,)-shaped buffers.
    scale = jnp.asarray(scale, jnp.float32).reshape(())
    zp = jnp.asarray(zero_point_neg, jnp.float32).reshape(())
    qmax = jnp.asarray(quant_max_val, jnp.float32).reshape(())

    if (total < _PALLAS_MIN_ELEMS and not force_pallas) or (total % 128 != 0):
        # Tiny tensors: custom-call launch cost dominates and blocks XLA fusion.
        # Non-128-multiple sizes: a lane-dense slab would need a full-tensor
        # pad + slice (2 extra HBM passes on a bandwidth-bound op) — plain XLA
        # streams the elementwise chain at roofline anyway.
        return asymmetric_quantize_ref(x, scale, zp, qmax)

    # Widest lane count that exactly divides the flattened size (prefer one
    # that also yields >= 8 rows) -> the (rows, lanes) view is a free bitcast.
    lanes = None
    for l in _LANE_CHOICES:
        if total % l == 0 and total // l >= _MIN_ROW_TILE:
            lanes = l
            break
    if lanes is None:
        for l in _LANE_CHOICES:
            if total % l == 0:
                lanes = l
                break
    rows = total // lanes

    max_block_bytes, vmem_limit, multi_core = _chip_config()
    itemsize = jnp.dtype(x.dtype).itemsize
    row_tile = max(
        _MIN_ROW_TILE,
        (max_block_bytes // (lanes * itemsize)) // _MIN_ROW_TILE * _MIN_ROW_TILE,
    )
    # Never use a block taller than the (sublane-rounded) slab.
    row_tile = min(row_tile, _round_up(rows, _MIN_ROW_TILE))
    if multi_core:
        # Only v7x has 2 TensorCores: give the 'parallel' axis >= 4 steps when
        # possible so the stream shards across both cores' DMA engines.
        while row_tile > _MIN_ROW_TILE and _ceil_div(rows, row_tile) < 4:
            row_tile = max(_MIN_ROW_TILE,
                           (row_tile // 2) // _MIN_ROW_TILE * _MIN_ROW_TILE)

    grid = (_ceil_div(rows, row_tile),)  # partial last block is masked by Pallas

    params = jnp.stack([scale, zp, qmax])
    x2 = x.reshape(rows, lanes)          # free reshape, no copy

    out2 = pl.pallas_call(
        _asym_quant_kernel,
        out_shape=jax.ShapeDtypeStruct((rows, lanes), x.dtype),
        grid_spec=pltpu.PrefetchScalarGridSpec(
            num_scalar_prefetch=0,
            grid=grid,
            in_specs=[
                pl.BlockSpec(memory_space=pltpu.MemorySpace.SMEM),   # params
                pl.BlockSpec((row_tile, lanes), lambda i: (i, 0)),   # x tile
            ],
            out_specs=pl.BlockSpec((row_tile, lanes), lambda i: (i, 0)),
        ),
        compiler_params=pltpu.CompilerParams(
            dimension_semantics=("parallel",),
            vmem_limit_bytes=vmem_limit,
        ),
    )(params, x2)

    return out2.reshape(x.shape)


if __name__ == "__main__":
    # Deterministic "buffer" init mirroring AsymmetricQuantizer.__init__ (bits=8).
    bits = 8
    quant_max_val = jnp.float32((1 << bits) - 1)    # 255.0

    key = jax.random.PRNGKey(0)
    k1, k2, k3 = jax.random.split(key, 3)

    # Case 1: module-sized example (NCHW 2x4x16x16), PyTorch-style (1,)-shaped
    # buffers.  Default path bypasses Pallas (tiny tensor); forced path
    # validates the kernel math on the same data.
    x_small = jax.random.normal(k1, (2, 4, 16, 16), dtype=jnp.float32) * 10.0
    scale_s = jnp.ones((1,), jnp.float32)            # register_buffer('scale', ones(1))
    zp_s = jnp.zeros((1,), jnp.float32)              # register_buffer('zero_point_neg', zeros(1))

    out_bypass = asymmetric_quantize(x_small, scale_s, zp_s, quant_max_val)
    out_forced = asymmetric_quantize(x_small, scale_s, zp_s, quant_max_val,
                                     force_pallas=True)
    jax.block_until_ready((out_bypass, out_forced))
    ref_small = asymmetric_quantize_ref(x_small, scale_s, zp_s, quant_max_val)
    assert out_forced.shape == x_small.shape and out_forced.dtype == x_small.dtype
    assert jnp.array_equal(out_bypass, ref_small), "bypass path mismatch"
    assert jnp.array_equal(out_forced, ref_small), "pallas path mismatch (small)"

    # Case 2: non-128-multiple spatial size (28*28) -> 49 rows of 1024 lanes,
    # exercising the masked partial block (no pad, no slice), plus a
    # NON-power-of-two scale to exercise exact in-kernel division.
    x_big = jax.random.normal(k2, (2, 32, 28, 28), dtype=jnp.float32) * 10.0
    scale_b = jnp.float32(0.1)
    zp_b = jnp.float32(-80.0)
    out_big = asymmetric_quantize(x_big, scale_b, zp_b, quant_max_val,
                                  force_pallas=True)
    out_big = jax.block_until_ready(out_big)
    ref_big = asymmetric_quantize_ref(x_big, scale_b, zp_b, quant_max_val)
    assert out_big.shape == x_big.shape and out_big.dtype == jnp.float32
    assert jnp.array_equal(out_big, ref_big), "pallas path mismatch (partial block)"

    # Case 3: native bf16 activations — blocks stay bf16 in HBM/VMEM, math in
    # f32 on the VPU, output cast back to bf16 (no f32 HBM round-trip).
    x_bf16 = (jax.random.normal(k3, (2, 64, 16, 16), dtype=jnp.float32) * 10.0
              ).astype(jnp.bfloat16)
    scale_c = jnp.float32(0.25)
    zp_c = jnp.float32(-40.0)
    out_bf16 = asymmetric_quantize(x_bf16, scale_c, zp_c, quant_max_val,
                                   force_pallas=True)
    out_bf16 = jax.block_until_ready(out_bf16)
    ref_bf16 = asymmetric_quantize_ref(x_bf16, scale_c, zp_c, quant_max_val)
    assert out_bf16.dtype == jnp.bfloat16
    assert jnp.array_equal(out_bf16, ref_bf16), "pallas path mismatch (bf16)"

    print("KERNEL_OK")
</pallas_src>

<mosaic_0001>
module attributes {stable_mosaic.version = 11 : i64} {
  func.func @_asym_quant_kernel(%arg0: i32, %arg1: memref<3xf32, #tpu.memory_space<smem>>, %arg2: memref<8x256xf32, #tpu.memory_space<vmem>>, %arg3: memref<8x256xf32, #tpu.memory_space<vmem>>) attributes {dimension_semantics = [#tpu.dimension_semantics<parallel>], iteration_bounds = array<i64: 1>, scalar_prefetch = 0 : i64, scratch_operands = 0 : i64, tpu.core_type = #tpu.core_type<tc>, window_params = [{transform_indices = @transform_0, window_bounds = array<i64: 3>}, {transform_indices = @transform_1, window_bounds = array<i64: 8, 256>}, {transform_indices = @transform_2, window_bounds = array<i64: 8, 256>}]} {
    %c0 = arith.constant 0 : index
    %0 = memref.load %arg1[%c0] : memref<3xf32, #tpu.memory_space<smem>>
    %c1 = arith.constant 1 : index
    %1 = memref.load %arg1[%c1] : memref<3xf32, #tpu.memory_space<smem>>
    %c2 = arith.constant 2 : index
    %2 = memref.load %arg1[%c2] : memref<3xf32, #tpu.memory_space<smem>>
    %c0_0 = arith.constant 0 : index
    %c0_1 = arith.constant 0 : index
    %3 = vector.load %arg2[%c0_0, %c0_1] : memref<8x256xf32, #tpu.memory_space<vmem>>, vector<8x256xf32>
    %4 = vector.broadcast %0 : f32 to vector<8x256xf32>
    %5 = arith.divf %3, %4 : vector<8x256xf32>
    %6 = vector.broadcast %1 : f32 to vector<8x256xf32>
    %7 = arith.subf %5, %6 : vector<8x256xf32>
    %8 = math.roundeven %7 : vector<8x256xf32>
    %cst = arith.constant 0.000000e+00 : f32
    %9 = vector.broadcast %cst : f32 to vector<8x256xf32>
    %10 = arith.maximumf %9, %8 : vector<8x256xf32>
    %11 = vector.broadcast %2 : f32 to vector<8x256xf32>
    %12 = arith.minimumf %11, %10 : vector<8x256xf32>
    %13 = vector.broadcast %1 : f32 to vector<8x256xf32>
    %14 = arith.addf %12, %13 : vector<8x256xf32>
    %15 = vector.broadcast %0 : f32 to vector<8x256xf32>
    %16 = arith.mulf %14, %15 : vector<8x256xf32>
    %c0_2 = arith.constant 0 : index
    %c0_3 = arith.constant 0 : index
    %17 = vector.load %arg3[%c0_2, %c0_3] : memref<8x256xf32, #tpu.memory_space<vmem>>, vector<8x256xf32>
    tpu.vector_store %arg3[%c0_2, %c0_3], %16 {strides = array<i32>} : memref<8x256xf32, #tpu.memory_space<vmem>>, vector<8x256xf32>,
    return
  }
  func.func @transform_0(%arg0: i32) -> i32 {
    %c0_i32 = arith.constant 0 : i32
    %c0_i32_0 = arith.constant 0 : i32
    return %c0_i32 : i32
  }
  func.func @transform_1(%arg0: i32) -> (i32, i32) {
    %c0_i32 = arith.constant 0 : i32
    %c0_i32_0 = arith.constant 0 : i32
    return %arg0, %c0_i32 : i32, i32
  }
  func.func @transform_2(%arg0: i32) -> (i32, i32) {
    %c0_i32 = arith.constant 0 : i32
    %c0_i32_0 = arith.constant 0 : i32
    return %arg0, %c0_i32 : i32, i32
  }
}

</mosaic_0001>

<llo_original>
// kernel: tpu_custom_call.1
$region0: #{tpu_custom_call.1}
  #allocation0 [shape = 'u32[]', space=smem, size = 0x4, offset = 0x4, fixed_abs, tag = 'smem constant byte address 0x4 - core index']
  #allocation1 [shape = 'u32[72,128]{1,0:T(1,128)}', space=vmem, size = 0x9000, scoped, tag = 'internal scratch']
  %s0 = inlined_call_operand.hbm [shape: f32[3], index: 0, kind: input, shape index: {}]
  %s1 = inlined_call_operand.hbm [shape: f32[8,256], index: 1, kind: input, shape index: {}]
  %s2 = inlined_call_operand.hbm [shape: f32[8,256], index: 2, kind: output, shape index: {}]
  %s3 = sld [smem:[#allocation0]]
  $region26: #{tpu_custom_call.1} parent=0
    _
  %s5 = ssub.s32 1, %s3
  %s6 = scalar_select 0, %s5, %s3
  $region1: #{tpu_custom_call.1} parent=0
    #allocation2 [shape = 'u8[512]{0}', space=smem, size = 0x200, scoped, tag = 'input window, operand 0, single buffered']
    #allocation3 [shape = 's32[1]{0}', space=sflag, size = 0x4, scoped, tag = 'scoped memory for tpu_custom_call.1']
    #allocation4 [shape = 's32[1]{0}', space=sflag, size = 0x4, scoped, tag = 'scoped memory for tpu_custom_call.1']
    #allocation5 [shape = 's32[1]{0}', space=sflag, size = 0x4, scoped, tag = 'scoped memory for tpu_custom_call.1']
    #allocation6 [shape = 'u8[8192]{0}', space=vmem, size = 0x2000, scoped, tag = 'input window, operand 1, single buffered']
    #allocation7 [shape = 'u8[8192]{0}', space=vmem, size = 0x2000, scoped, tag = 'output window, operand 0, single buffered']
    %7 = vsyncpa [#allocation5], 0
    %8 = vsyncpa [#allocation3], 0
    %9 = vsyncpa [#allocation4], 0
    // Predicated region
    $region2: #{tpu_custom_call.1} parent=1 // pred_check
      _
    $region3: #{tpu_custom_call.1} parent=1 // pred_check_branch
      %11 = sbr.rel (0) target = $region5
    $region4: #{tpu_custom_call.1} parent=1 // pred_region
      %13 = vsyncadd [#allocation5], 0
      %s15 = sshll.u32 %s0, 4
      %s16 = int_to_ptr.hbm [resolvable:$true] %s15
      %18 = dma.hbm_to_smem %s16, 16, [#allocation2], [#allocation5]
    $region5: #{tpu_custom_call.1} parent=1 // pred_fallthru
      _
    // Predicated region
    $region6: #{tpu_custom_call.1} parent=1 // pred_check
      _
    $region7: #{tpu_custom_call.1} parent=1 // pred_check_branch
      %20 = sbr.rel (0) target = $region9
    $region8: #{tpu_custom_call.1} parent=1 // pred_region
      %22 = vsyncadd [#allocation3], 0
      %s24 = sshll.u32 %s1, 4
      %s25 = int_to_ptr.hbm [resolvable:$true] %s24
      %s26 = sshll.u32 [#allocation6], 4
      %s27 = int_to_ptr.vmem [resolvable:$true] %s26
      %29 = dma.hbm_to_vmem [thread:$0]  %s25, 256, %s27, [#allocation3]
    $region9: #{tpu_custom_call.1} parent=1 // pred_fallthru
      _
    // Predicated region
    $region10: #{tpu_custom_call.1} parent=1 // pred_check
      _
    $region11: #{tpu_custom_call.1} parent=1 // pred_check_branch
      %31 = sbr.rel (0) target = $region13
    $region12: #{tpu_custom_call.1} parent=1 // pred_region
      %33 = dma.done [#allocation5], 16
    $region13: #{tpu_custom_call.1} parent=1 // pred_fallthru
      _
    // Predicated region
    $region14: #{tpu_custom_call.1} parent=1 // pred_check
      _
    $region15: #{tpu_custom_call.1} parent=1 // pred_check_branch
      %35 = sbr.rel (0) target = $region17
    $region16: #{tpu_custom_call.1} parent=1 // pred_region
      %37 = dma.done [#allocation3], 256
    $region17: #{tpu_custom_call.1} parent=1 // pred_fallthru
      _
    %38 = sfence
    %s39 = sld [smem:[#allocation2]]
    %s40 = sld [smem:[#allocation2 + $0x1]]
    %s41 = sld [smem:[#allocation2 + $0x2]]
    %v42 = vld [vmem:[#allocation6] sm:$0xff]
    %v43 = vld [vmem:[#allocation6 + $0x8] sm:$0xff]
    %v44 = vstv %s39
    %v45 = vrcp.pop %v44
    %v46 = vmul.f32 %v44, %v45
    %v47 = vsub.f32 1.0, %v46
    %v48 = vmul.f32 %v45, %v47
    %v49 = vadd.f32 %v45, %v48
    %vm50 = vweird.f32 %v44
    %vm51 = vweird.f32 %v45
    %vm52 = vmor %vm50, %vm51
    %v53 = vsel %vm52, %v45, %v49
    %v54 = vand.u32 2147483647, %v44
    %vm55 = vcmp.eq.f32.partialorder %v54, 8.507059e+37
    %v56 = vand.u32 %v44, 2147483648
    %v57 = vor.u32 1.1754944e-38, %v56
    %v58 = vsel %vm55, %v57, %v53
    %v59 = vmul.f32 %v42, %v58
    %v60 = vmul.f32 %v43, %v58
    %v61 = vstv %s40
    %v62 = vsub.f32 %v59, %v61
    %v63 = vsub.f32 %v60, %v61
    %v64 = vround.ne.pseudo %v62
    %v65 = vround.ne.pseudo %v63
    %v66 = vmax.f32 %v64, 0.0
    %v67 = vmax.f32 %v65, 0.0
    %v68 = vstv %s41
    %v69 = vmin.f32 %v68, %v66
    %v70 = vmin.f32 %v68, %v67
    %v71 = vadd.f32 %v69, %v61
    %v72 = vadd.f32 %v70, %v61
    %v73 = vmul.f32 %v71, %v44
    %v74 = vmul.f32 %v72, %v44
    %75 = vst [vmem:[#allocation7] sm:$0xff] %v73
    %76 = vst [vmem:[#allocation7 + $0x8] sm:$0xff] %v74
    // Predicated region
    $region18: #{tpu_custom_call.1} parent=1 // pred_check
      _
    $region19: #{tpu_custom_call.1} parent=1 // pred_check_branch
      %78 = sbr.rel (0) target = $region21
    $region20: #{tpu_custom_call.1} parent=1 // pred_region
      %80 = vsyncadd [#allocation4], 0
      %s82 = sshll.u32 [#allocation7], 4
      %s83 = int_to_ptr.vmem [resolvable:$true] %s82
      %s84 = sshll.u32 %s2, 4
      %s85 = int_to_ptr.hbm [resolvable:$true] %s84
      %87 = dma.vmem_to_hbm [thread:$0]  %s83, 256, %s85, [#allocation4]
    $region21: #{tpu_custom_call.1} parent=1 // pred_fallthru
      _
    // Predicated region
    $region22: #{tpu_custom_call.1} parent=1 // pred_check
      _
    $region23: #{tpu_custom_call.1} parent=1 // pred_check_branch
      %89 = sbr.rel (0) target = $region25
    $region24: #{tpu_custom_call.1} parent=1 // pred_region
      %91 = dma.done [#allocation4], 256
    $region25: #{tpu_custom_call.1} parent=1 // pred_fallthru
      _
    %92 = vsyncpa [#allocation3], 1
    %93 = vsyncpa [#allocation4], 1
    %94 = vsyncpa [#allocation5], 1

</llo_original>
